<compile_context>
chip_gen: v7x
topology: tpu7x:2x2x1
jax: 0.10.0
libtpu: 0.0.40
codegen_flags: <defaults>
</compile_context>

<pallas_src>
import functools

import jax
import jax.numpy as jnp
from jax import lax
from jax.experimental import pallas as pl
from jax.experimental.pallas import tpu as pltpu

EPS = 1e-5
LANE = 128


def _round_up(n, m):
    return (n + m - 1) // m * m


def _choose_tile_h(batch, d_in, hp, cp, budget_bytes, max_tile_h, feat_bytes):
    """Largest 128-multiple divisor of hp (<= max_tile_h) whose double-buffered
    streamed blocks (w0 tile, w1 tile, bn1 params, feature tile) fit the VMEM
    budget after subtracting the resident buffers."""
    resident = 2 * (batch * d_in * 4 + 2 * d_in * 4 + batch * cp * 4) + 2 * d_in * 4
    stream_budget = max(budget_bytes - resident, 0)
    best = 128
    t = 128
    while t <= min(hp, max_tile_h):
        if hp % t == 0:
            per_step = (d_in * t * 2          # w0 tile (bf16)
                        + t * cp * 2          # w1 tile (bf16)
                        + 3 * t * 4           # stacked c0/g1/b1 (f32)
                        + batch * t * feat_bytes)  # feature out tile
            if 2 * per_step <= stream_budget:  # x2: double-buffered
                best = t
        t += 128
    return best


def _vmem_limit_bytes(batch, d_in, cp, tile_h, feat_bytes):
    streamed = 2 * (d_in * tile_h * 2 + tile_h * cp * 2 + 3 * tile_h * 4
                    + batch * tile_h * feat_bytes)
    resident = 2 * (batch * d_in * 4 + 2 * d_in * 4 + batch * cp * 4)
    scratch = 2 * d_in * 4
    total = streamed + resident + scratch
    # 1.5x + 4 MiB headroom for Mosaic-internal scratch / layout padding.
    # With the default 32 MiB streaming budget this stays <= ~56 MiB (v7x-safe);
    # it may rise toward ~100 MiB only if a larger budget is requested.
    return int(min(max(total * 3 // 2 + (4 << 20), 8 << 20), 100 << 20))


def head_kernel(x_ref, g0_ref, b0_ref,      # (B, D_in), (1, D_in), (1, D_in)
                w0_ref,                     # (1, D_in, tile_h) bf16 (contig slab)
                bn1_ref,                    # (3, tile_h): rows = c0, gamma1, beta1
                w1_ref,                     # (tile_h, Cp) bf16
                out_ref, feat_ref,          # (1, B, Cp) f32, (B, tile_h)
                a0_ref, s0_ref,             # scratch: (1, D_in) f32 each
                *, batch):
    j = pl.program_id(1)                    # H-tile index within this core
    inv_b = 1.0 / batch

    # ---- once per core: bn0 affine (two-pass stats) + zero the partial out --
    @pl.when(j == 0)
    def _init():
        x = x_ref[...]                                    # f32 (B, D_in), resident
        m0 = jnp.sum(x, axis=0, keepdims=True) * inv_b
        xc = x - m0
        v0 = jnp.sum(xc * xc, axis=0, keepdims=True) * inv_b
        a0 = g0_ref[...] * lax.rsqrt(v0 + EPS)
        a0_ref[...] = a0
        s0_ref[...] = b0_ref[...] - m0 * a0
        out_ref[...] = jnp.zeros_like(out_ref)

    # ---- bn0 as one FMA, cast to the bf16 MXU operand (cheap, VALU slack) ---
    xn = (x_ref[...] * a0_ref[...] + s0_ref[...]).astype(jnp.bfloat16)

    # ---- fc_0 tile (bf16 x bf16 -> f32 on MXU) + bias + ReLU ----------------
    h = jnp.dot(xn, w0_ref[0], preferred_element_type=jnp.float32) + bn1_ref[0:1, :]
    h = jnp.maximum(h, 0.0)

    # ---- bn1: two-pass per-feature batch stats (safe per H tile) ------------
    m1 = jnp.sum(h, axis=0, keepdims=True) * inv_b
    hc = h - m1
    v1 = jnp.sum(hc * hc, axis=0, keepdims=True) * inv_b
    a1 = bn1_ref[1:2, :] * lax.rsqrt(v1 + EPS)
    f0 = hc * a1 + bn1_ref[2:3, :]
    feat_ref[...] = f0.astype(feat_ref.dtype)

    # ---- fc_1 partial product, accumulated into the resident output block ---
    out_ref[0] += jnp.dot(f0.astype(jnp.bfloat16), w1_ref[...],
                          preferred_element_type=jnp.float32)


def head_forward(x, p):
    """x: (B, input_dim) f32.  p: output of prepare_params.
    Returns {'output': (B, n_class) f32, 'feature': (B, hidden_dim) feat_dtype}."""
    B, D_in = x.shape
    tile_h = p["tile_h"]
    n_tiles = p["n_tiles"]
    num_cores = p["num_cores"]
    tpc = n_tiles // num_cores
    Hp = n_tiles * tile_h
    Cp = p["w1"].shape[1]
    H, C = p["hidden_dim"], p["n_class"]
    feat_dtype = p["feature_dtype"]
    feat_bytes = jnp.dtype(feat_dtype).itemsize

    def tile_idx(c, j):
        return c * tpc + j

    grid_spec = pltpu.PrefetchScalarGridSpec(
        num_scalar_prefetch=0,
        grid=(num_cores, tpc),
        in_specs=[
            pl.BlockSpec((B, D_in), lambda c, j: (0, 0)),                      # x (resident)
            pl.BlockSpec((1, D_in), lambda c, j: (0, 0)),                      # gamma0
            pl.BlockSpec((1, D_in), lambda c, j: (0, 0)),                      # beta0
            pl.BlockSpec((1, D_in, tile_h), lambda c, j: (tile_idx(c, j), 0, 0)),  # w0 slab
            pl.BlockSpec((3, tile_h), lambda c, j: (0, tile_idx(c, j))),       # c0/g1/b1
            pl.BlockSpec((tile_h, Cp), lambda c, j: (tile_idx(c, j), 0)),      # w1
            # NOTE: if profiling on v6e shows exposed DMA at small B, add
            # pipeline_mode=pl.Buffered(3) to the w0/w1 specs (VMEM permitting).
        ],
        out_specs=(
            pl.BlockSpec((1, B, Cp), lambda c, j: (c, 0, 0)),                  # per-core partial
            pl.BlockSpec((B, tile_h), lambda c, j: (0, tile_idx(c, j))),       # feature
        ),
        scratch_shapes=[
            pltpu.VMEM((1, D_in), jnp.float32),   # bn0 scale
            pltpu.VMEM((1, D_in), jnp.float32),   # bn0 shift
        ],
    )

    kernel = functools.partial(head_kernel, batch=B)

    out_partial, feat_p = pl.pallas_call(
        kernel,
        out_shape=(
            jax.ShapeDtypeStruct((num_cores, B, Cp), jnp.float32),
            jax.ShapeDtypeStruct((B, Hp), feat_dtype),
        ),
        grid_spec=grid_spec,
        compiler_params=pltpu.CompilerParams(
            dimension_semantics=("parallel", "arbitrary"),   # cores x reduction
            vmem_limit_bytes=_vmem_limit_bytes(B, D_in, Cp, tile_h, feat_bytes),
        ),
    )(x, p["g0"], p["b0"], p["w0"], p["bn1"], p["w1"])

    # Tiny XLA epilogue: sum per-core partials, add fc_1 bias, drop padding.
    output = out_partial.sum(axis=0)[:, :C] + p["c1"]
    return {"output": output, "feature": feat_p[:, :H]}


def init_params(key, input_dim, hidden_dim, n_class):
    """f32 parameters in torch layout (linear weights stored as (in, out))."""
    ks = jax.random.split(key, 6)
    g0 = 1.0 + 0.1 * jax.random.normal(ks[0], (1, input_dim), jnp.float32)
    b0 = 0.1 * jax.random.normal(ks[1], (1, input_dim), jnp.float32)
    g1 = 1.0 + 0.1 * jax.random.normal(ks[2], (1, hidden_dim), jnp.float32)
    b1 = 0.1 * jax.random.normal(ks[3], (1, hidden_dim), jnp.float32)
    lim0 = 1.0 / jnp.sqrt(input_dim)
    w0 = jax.random.uniform(ks[4], (input_dim, hidden_dim), jnp.float32, -lim0, lim0)
    c0 = jnp.zeros((1, hidden_dim), jnp.float32)
    lim1 = 1.0 / jnp.sqrt(hidden_dim)
    w1 = jax.random.uniform(ks[5], (hidden_dim, n_class), jnp.float32, -lim1, lim1)
    c1 = jnp.zeros((1, n_class), jnp.float32)
    return dict(g0=g0, b0=b0, w0=w0, c0=c0, g1=g1, b1=b1, w1=w1, c1=c1)


def prepare_params(p, input_dim, hidden_dim, n_class, batch,
                   feature_dtype=jnp.bfloat16,
                   vmem_budget_bytes=32 * 1024 * 1024,   # v7x-safe; ~96 MiB OK on v5e/v6e
                   max_tile_h=1024):
    """Pad hidden/class dims to lane multiples (zeros -> exact no-op), pick the
    H tile by VMEM budget, pack w0 into contiguous per-tile slabs, stack the
    small per-H params, and ship matmul weights as bf16.  Done once, off the
    hot path."""
    Hp = _round_up(hidden_dim, LANE)
    Cp = _round_up(n_class, LANE)
    feat_bytes = jnp.dtype(feature_dtype).itemsize
    tile_h = _choose_tile_h(batch, input_dim, Hp, Cp, vmem_budget_bytes,
                            max_tile_h, feat_bytes)
    n_tiles = Hp // tile_h
    # Shard H tiles across the two v7x TensorCores when evenly splittable;
    # on 1-TC chips the parallel axis is just an outer loop (no-op).
    num_cores = 2 if (n_tiles >= 2 and n_tiles % 2 == 0) else 1

    def pad_cols(a, n):
        return jnp.pad(a, ((0, 0), (0, n - a.shape[1])))

    # w0 -> H-major contiguous slabs (n_tiles, D_in, tile_h), bf16.
    w0 = pad_cols(p["w0"], Hp)
    w0 = w0.reshape(input_dim, n_tiles, tile_h).transpose(1, 0, 2).astype(jnp.bfloat16)

    # Stacked per-H-tile params: row0 = fc_0 bias, row1 = gamma1, row2 = beta1.
    # Padded gamma1 = 0 -> padded feature columns are exactly 0.
    bn1 = jnp.concatenate([pad_cols(p["c0"], Hp),
                           pad_cols(p["g1"], Hp),
                           pad_cols(p["b1"], Hp)], axis=0)

    w1 = jnp.pad(p["w1"], ((0, Hp - hidden_dim), (0, Cp - n_class))).astype(jnp.bfloat16)

    return dict(g0=p["g0"], b0=p["b0"], w0=w0, bn1=bn1, w1=w1, c1=p["c1"],
                hidden_dim=hidden_dim, n_class=n_class,
                tile_h=tile_h, n_tiles=n_tiles, num_cores=num_cores,
                feature_dtype=feature_dtype, batch=batch)


def head_ref(x, p, mxu_dtype=jnp.float32):
    """Pure-JAX reference of the module's training-mode forward.  With
    mxu_dtype=bfloat16 it mirrors the kernel's MXU operand precision."""
    def mm(a, w):
        return jnp.dot(a.astype(mxu_dtype), w.astype(mxu_dtype),
                       preferred_element_type=jnp.float32)

    m0 = x.mean(0, keepdims=True)
    v0 = ((x - m0) ** 2).mean(0, keepdims=True)
    xn = (x - m0) / jnp.sqrt(v0 + EPS) * p["g0"] + p["b0"]
    h = jnp.maximum(mm(xn, p["w0"]) + p["c0"], 0.0)
    m1 = h.mean(0, keepdims=True)
    v1 = ((h - m1) ** 2).mean(0, keepdims=True)
    f0 = (h - m1) / jnp.sqrt(v1 + EPS) * p["g1"] + p["b1"]
    return {"output": mm(f0, p["w1"]) + p["c1"], "feature": f0}


if __name__ == "__main__":
    key = jax.random.PRNGKey(0)

    def run_case(B, input_dim, hidden_dim, n_class, max_tile_h=1024):
        kx, kp = jax.random.split(jax.random.fold_in(key, hidden_dim))
        x = jax.random.normal(kx, (B, input_dim), jnp.float32)
        params = init_params(kp, input_dim, hidden_dim, n_class)
        prepped = prepare_params(params, input_dim, hidden_dim, n_class,
                                 batch=B, max_tile_h=max_tile_h)

        res = head_forward(x, prepped)
        jax.block_until_ready(res)

        assert res["output"].shape == (B, n_class)
        assert res["feature"].shape == (B, hidden_dim)
        feat = res["feature"].astype(jnp.float32)
        out = res["output"]

        # Tight check vs. a reference using the same bf16 MXU operands
        # (validates BN math, padding, tiling, per-core accumulation).
        ref_bf = head_ref(x, params, mxu_dtype=jnp.bfloat16)
        assert jnp.allclose(feat, ref_bf["feature"], atol=3e-2, rtol=3e-2)
        assert jnp.allclose(out, ref_bf["output"], atol=3e-2, rtol=3e-2)

        # Looser sanity check vs. exact f32 module semantics.
        ref_f32 = head_ref(x, params, mxu_dtype=jnp.float32)
        assert jnp.allclose(feat, ref_f32["feature"], atol=0.25, rtol=0.05)
        assert jnp.allclose(out, ref_f32["output"], atol=0.25, rtol=0.05)

    # Small shapes: single H tile, single partial (degenerate grid).
    run_case(B=64, input_dim=32, hidden_dim=32, n_class=8)
    # Multi-tile + 2-way partial ("megacore") path: 4 H tiles of 128, split 2x2.
    run_case(B=64, input_dim=64, hidden_dim=512, n_class=8, max_tile_h=128)

    print("KERNEL_OK")
</pallas_src>

<mosaic_0001>
module attributes {stable_mosaic.version = 11 : i64} {
  func.func @head_kernel(%arg0: i32, %arg1: i32, %arg2: memref<64x32xf32, #tpu.memory_space<vmem>>, %arg3: memref<1x32xf32, #tpu.memory_space<vmem>>, %arg4: memref<1x32xf32, #tpu.memory_space<vmem>>, %arg5: memref<1x32x128xbf16, #tpu.memory_space<vmem>>, %arg6: memref<3x128xf32, #tpu.memory_space<vmem>>, %arg7: memref<128x128xbf16, #tpu.memory_space<vmem>>, %arg8: memref<1x64x128xf32, #tpu.memory_space<vmem>>, %arg9: memref<64x128xbf16, #tpu.memory_space<vmem>>, %arg10: memref<1x32xf32, #tpu.memory_space<vmem>>, %arg11: memref<1x32xf32, #tpu.memory_space<vmem>>) attributes {dimension_semantics = [#tpu.dimension_semantics<parallel>, #tpu.dimension_semantics<arbitrary>], iteration_bounds = array<i64: 1, 1>, scalar_prefetch = 0 : i64, scratch_operands = 2 : i64, tpu.core_type = #tpu.core_type<tc>, window_params = [{pipeline_mode = #tpu.pipeline_mode<synchronous>, transform_indices = @transform_0, window_bounds = array<i64: 64, 32>}, {pipeline_mode = #tpu.pipeline_mode<synchronous>, transform_indices = @transform_1, window_bounds = array<i64: 1, 32>}, {pipeline_mode = #tpu.pipeline_mode<synchronous>, transform_indices = @transform_2, window_bounds = array<i64: 1, 32>}, {transform_indices = @transform_3, window_bounds = array<i64: 1, 32, 128>}, {transform_indices = @transform_4, window_bounds = array<i64: 3, 128>}, {transform_indices = @transform_5, window_bounds = array<i64: 128, 128>}, {transform_indices = @transform_6, window_bounds = array<i64: 1, 64, 128>}, {transform_indices = @transform_7, window_bounds = array<i64: 64, 128>}]} {
    %c0_i32 = arith.constant 0 : i32
    %0 = arith.cmpi eq, %arg1, %c0_i32 : i32
    %1 = arith.extui %0 : i1 to i32
    %c0_i32_0 = arith.constant 0 : i32
    %2 = arith.cmpi ne, %1, %c0_i32_0 : i32
    scf.if %2 {
      %c0_30 = arith.constant 0 : index
      %c0_31 = arith.constant 0 : index
      %51 = vector.load %arg2[%c0_30, %c0_31] : memref<64x32xf32, #tpu.memory_space<vmem>>, vector<64x32xf32>
      %cst_32 = arith.constant dense<0.000000e+00> : vector<32xf32>
      %52 = vector.multi_reduction <add>, %51, %cst_32 [0] : vector<64x32xf32> to vector<32xf32>
      %53 = vector.shape_cast %52 : vector<32xf32> to vector<1x32xf32>
      %cst_33 = arith.constant 1.562500e-02 : f32
      %54 = vector.broadcast %cst_33 : f32 to vector<1x32xf32>
      %55 = arith.mulf %53, %54 : vector<1x32xf32>
      %56 = vector.broadcast %55 : vector<1x32xf32> to vector<64x32xf32>
      %57 = arith.subf %51, %56 : vector<64x32xf32>
      %58 = arith.mulf %57, %57 : vector<64x32xf32>
      %cst_34 = arith.constant dense<0.000000e+00> : vector<32xf32>
      %59 = vector.multi_reduction <add>, %58, %cst_34 [0] : vector<64x32xf32> to vector<32xf32>
      %60 = vector.shape_cast %59 : vector<32xf32> to vector<1x32xf32>
      %cst_35 = arith.constant 1.562500e-02 : f32
      %61 = vector.broadcast %cst_35 : f32 to vector<1x32xf32>
      %62 = arith.mulf %60, %61 : vector<1x32xf32>
      %c0_36 = arith.constant 0 : index
      %c0_37 = arith.constant 0 : index
      %63 = vector.load %arg3[%c0_36, %c0_37] : memref<1x32xf32, #tpu.memory_space<vmem>>, vector<1x32xf32>
      %cst_38 = arith.constant 9.99999974E-6 : f32
      %64 = vector.broadcast %cst_38 : f32 to vector<1x32xf32>
      %65 = arith.addf %62, %64 : vector<1x32xf32>
      %66 = math.rsqrt %65 : vector<1x32xf32>
      %67 = arith.mulf %63, %66 : vector<1x32xf32>
      %c0_39 = arith.constant 0 : index
      %c0_40 = arith.constant 0 : index
      %68 = vector.load %arg10[%c0_39, %c0_40] : memref<1x32xf32, #tpu.memory_space<vmem>>, vector<1x32xf32>
      tpu.vector_store %arg10[%c0_39, %c0_40], %67 {strides = array<i32>} : memref<1x32xf32, #tpu.memory_space<vmem>>, vector<1x32xf32>,
      %c0_41 = arith.constant 0 : index
      %c0_42 = arith.constant 0 : index
      %69 = vector.load %arg4[%c0_41, %c0_42] : memref<1x32xf32, #tpu.memory_space<vmem>>, vector<1x32xf32>
      %70 = arith.mulf %55, %67 : vector<1x32xf32>
      %71 = arith.subf %69, %70 : vector<1x32xf32>
      %c0_43 = arith.constant 0 : index
      %c0_44 = arith.constant 0 : index
      %72 = vector.load %arg11[%c0_43, %c0_44] : memref<1x32xf32, #tpu.memory_space<vmem>>, vector<1x32xf32>
      tpu.vector_store %arg11[%c0_43, %c0_44], %71 {strides = array<i32>} : memref<1x32xf32, #tpu.memory_space<vmem>>, vector<1x32xf32>,
      %cst_45 = arith.constant 0.000000e+00 : f32
      %73 = vector.broadcast %cst_45 : f32 to vector<1x64x128xf32>
      %c0_46 = arith.constant 0 : index
      %c0_47 = arith.constant 0 : index
      %c0_48 = arith.constant 0 : index
      %74 = vector.load %arg8[%c0_46, %c0_47, %c0_48] : memref<1x64x128xf32, #tpu.memory_space<vmem>>, vector<1x64x128xf32>
      tpu.vector_store %arg8[%c0_46, %c0_47, %c0_48], %73 {strides = array<i32>} : memref<1x64x128xf32, #tpu.memory_space<vmem>>, vector<1x64x128xf32>,
    } else {
    }
    %c0 = arith.constant 0 : index
    %c0_1 = arith.constant 0 : index
    %3 = vector.load %arg2[%c0, %c0_1] : memref<64x32xf32, #tpu.memory_space<vmem>>, vector<64x32xf32>
    %c0_2 = arith.constant 0 : index
    %c0_3 = arith.constant 0 : index
    %4 = vector.load %arg10[%c0_2, %c0_3] : memref<1x32xf32, #tpu.memory_space<vmem>>, vector<1x32xf32>
    %5 = vector.broadcast %4 : vector<1x32xf32> to vector<64x32xf32>
    %6 = arith.mulf %3, %5 : vector<64x32xf32>
    %c0_4 = arith.constant 0 : index
    %c0_5 = arith.constant 0 : index
    %7 = vector.load %arg11[%c0_4, %c0_5] : memref<1x32xf32, #tpu.memory_space<vmem>>, vector<1x32xf32>
    %8 = vector.broadcast %7 : vector<1x32xf32> to vector<64x32xf32>
    %9 = arith.addf %6, %8 : vector<64x32xf32>
    %10 = arith.truncf %9 : vector<64x32xf32> to vector<64x32xbf16>
    %c0_6 = arith.constant 0 : index
    %c0_7 = arith.constant 0 : index
    %c0_8 = arith.constant 0 : index
    %11 = vector.load %arg5[%c0_6, %c0_7, %c0_8] : memref<1x32x128xbf16, #tpu.memory_space<vmem>>, vector<1x32x128xbf16>
    %12 = vector.shape_cast %11 : vector<1x32x128xbf16> to vector<32x128xbf16>
    %cst = arith.constant dense<0.000000e+00> : vector<64x128xf32>
    %13 = tpu.matmul %10, %12, %cst {dimension_numbers = #tpu.dot_dimension_numbers<[1], [0], [0], [1], [0, 0, 1, 1], [], []>} : vector<64x32xbf16>, vector<32x128xbf16>, vector<64x128xf32> -> vector<64x128xf32>
    %c0_9 = arith.constant 0 : index
    %c0_10 = arith.constant 0 : index
    %14 = vector.load %arg6[%c0_9, %c0_10] : memref<3x128xf32, #tpu.memory_space<vmem>>, vector<1x128xf32>
    %15 = vector.broadcast %14 : vector<1x128xf32> to vector<64x128xf32>
    %16 = arith.addf %13, %15 : vector<64x128xf32>
    %cst_11 = arith.constant 0.000000e+00 : f32
    %17 = vector.broadcast %cst_11 : f32 to vector<64x128xf32>
    %18 = arith.maximumf %16, %17 : vector<64x128xf32>
    %cst_12 = arith.constant dense<0.000000e+00> : vector<128xf32>
    %19 = vector.multi_reduction <add>, %18, %cst_12 [0] : vector<64x128xf32> to vector<128xf32>
    %20 = vector.shape_cast %19 : vector<128xf32> to vector<1x128xf32>
    %cst_13 = arith.constant 1.562500e-02 : f32
    %21 = vector.broadcast %cst_13 : f32 to vector<1x128xf32>
    %22 = arith.mulf %20, %21 : vector<1x128xf32>
    %23 = vector.broadcast %22 : vector<1x128xf32> to vector<64x128xf32>
    %24 = arith.subf %18, %23 : vector<64x128xf32>
    %25 = arith.mulf %24, %24 : vector<64x128xf32>
    %cst_14 = arith.constant dense<0.000000e+00> : vector<128xf32>
    %26 = vector.multi_reduction <add>, %25, %cst_14 [0] : vector<64x128xf32> to vector<128xf32>
    %27 = vector.shape_cast %26 : vector<128xf32> to vector<1x128xf32>
    %cst_15 = arith.constant 1.562500e-02 : f32
    %28 = vector.broadcast %cst_15 : f32 to vector<1x128xf32>
    %29 = arith.mulf %27, %28 : vector<1x128xf32>
    %c1 = arith.constant 1 : index
    %c0_16 = arith.constant 0 : index
    %30 = vector.load %arg6[%c1, %c0_16] : memref<3x128xf32, #tpu.memory_space<vmem>>, vector<1x128xf32>
    %cst_17 = arith.constant 9.99999974E-6 : f32
    %31 = vector.broadcast %cst_17 : f32 to vector<1x128xf32>
    %32 = arith.addf %29, %31 : vector<1x128xf32>
    %33 = math.rsqrt %32 : vector<1x128xf32>
    %34 = arith.mulf %30, %33 : vector<1x128xf32>
    %35 = vector.broadcast %34 : vector<1x128xf32> to vector<64x128xf32>
    %36 = arith.mulf %24, %35 : vector<64x128xf32>
    %c2 = arith.constant 2 : index
    %c0_18 = arith.constant 0 : index
    %37 = vector.load %arg6[%c2, %c0_18] : memref<3x128xf32, #tpu.memory_space<vmem>>, vector<1x128xf32>
    %38 = vector.broadcast %37 : vector<1x128xf32> to vector<64x128xf32>
    %39 = arith.addf %36, %38 : vector<64x128xf32>
    %40 = arith.truncf %39 : vector<64x128xf32> to vector<64x128xbf16>
    %c0_19 = arith.constant 0 : index
    %c0_20 = arith.constant 0 : index
    %41 = vector.load %arg9[%c0_19, %c0_20] : memref<64x128xbf16, #tpu.memory_space<vmem>>, vector<64x128xbf16>
    tpu.vector_store %arg9[%c0_19, %c0_20], %40 {strides = array<i32>} : memref<64x128xbf16, #tpu.memory_space<vmem>>, vector<64x128xbf16>,
    %c0_21 = arith.constant 0 : index
    %c0_22 = arith.constant 0 : index
    %c0_23 = arith.constant 0 : index
    %42 = vector.load %arg8[%c0_21, %c0_22, %c0_23] : memref<1x64x128xf32, #tpu.memory_space<vmem>>, vector<1x64x128xf32>
    %43 = vector.shape_cast %42 : vector<1x64x128xf32> to vector<64x128xf32>
    %44 = arith.truncf %39 : vector<64x128xf32> to vector<64x128xbf16>
    %c0_24 = arith.constant 0 : index
    %c0_25 = arith.constant 0 : index
    %45 = vector.load %arg7[%c0_24, %c0_25] : memref<128x128xbf16, #tpu.memory_space<vmem>>, vector<128x128xbf16>
    %cst_26 = arith.constant dense<0.000000e+00> : vector<64x128xf32>
    %46 = tpu.matmul %44, %45, %cst_26 {dimension_numbers = #tpu.dot_dimension_numbers<[1], [0], [0], [1], [0, 0, 1, 1], [], []>} : vector<64x128xbf16>, vector<128x128xbf16>, vector<64x128xf32> -> vector<64x128xf32>
    %47 = arith.addf %43, %46 : vector<64x128xf32>
    %c0_27 = arith.constant 0 : index
    %c0_28 = arith.constant 0 : index
    %c0_29 = arith.constant 0 : index
    %48 = vector.load %arg8[%c0_27, %c0_28, %c0_29] : memref<1x64x128xf32, #tpu.memory_space<vmem>>, vector<1x64x128xf32>
    %49 = vector.shape_cast %48 : vector<1x64x128xf32> to vector<64x128xf32>
    %50 = vector.shape_cast %47 : vector<64x128xf32> to vector<1x64x128xf32>
    tpu.vector_store %arg8[%c0_27, %c0_28, %c0_29], %50 {strides = array<i32>} : memref<1x64x128xf32, #tpu.memory_space<vmem>>, vector<1x64x128xf32>,
    return
  }
  func.func @transform_0(%arg0: i32, %arg1: i32) -> (i32, i32) {
    %c0_i32 = arith.constant 0 : i32
    %c0_i32_0 = arith.constant 0 : i32
    %c0_i32_1 = arith.constant 0 : i32
    return %c0_i32, %c0_i32_0 : i32, i32
  }
  func.func @transform_1(%arg0: i32, %arg1: i32) -> (i32, i32) {
    %c0_i32 = arith.constant 0 : i32
    %c0_i32_0 = arith.constant 0 : i32
    %c0_i32_1 = arith.constant 0 : i32
    return %c0_i32, %c0_i32_0 : i32, i32
  }
  func.func @transform_2(%arg0: i32, %arg1: i32) -> (i32, i32) {
    %c0_i32 = arith.constant 0 : i32
    %c0_i32_0 = arith.constant 0 : i32
    %c0_i32_1 = arith.constant 0 : i32
    return %c0_i32, %c0_i32_0 : i32, i32
  }
  func.func @transform_3(%arg0: i32, %arg1: i32) -> (i32, i32, i32) {
    %c1_i32 = arith.constant 1 : i32
    %0 = arith.muli %arg0, %c1_i32 : i32
    %1 = arith.addi %0, %arg1 : i32
    %c0_i32 = arith.constant 0 : i32
    %c0_i32_0 = arith.constant 0 : i32
    %c0_i32_1 = arith.constant 0 : i32
    return %1, %c0_i32, %c0_i32_0 : i32, i32, i32
  }
  func.func @transform_4(%arg0: i32, %arg1: i32) -> (i32, i32) {
    %c1_i32 = arith.constant 1 : i32
    %0 = arith.muli %arg0, %c1_i32 : i32
    %1 = arith.addi %0, %arg1 : i32
    %c0_i32 = arith.constant 0 : i32
    %c0_i32_0 = arith.constant 0 : i32
    return %c0_i32, %1 : i32, i32
  }
  func.func @transform_5(%arg0: i32, %arg1: i32) -> (i32, i32) {
    %c1_i32 = arith.constant 1 : i32
    %0 = arith.muli %arg0, %c1_i32 : i32
    %1 = arith.addi %0, %arg1 : i32
    %c0_i32 = arith.constant 0 : i32
    %c0_i32_0 = arith.constant 0 : i32
    return %1, %c0_i32 : i32, i32
  }
  func.func @transform_6(%arg0: i32, %arg1: i32) -> (i32, i32, i32) {
    %c0_i32 = arith.constant 0 : i32
    %c0_i32_0 = arith.constant 0 : i32
    %c0_i32_1 = arith.constant 0 : i32
    return %arg0, %c0_i32, %c0_i32_0 : i32, i32, i32
  }
  func.func @transform_7(%arg0: i32, %arg1: i32) -> (i32, i32) {
    %c1_i32 = arith.constant 1 : i32
    %0 = arith.muli %arg0, %c1_i32 : i32
    %1 = arith.addi %0, %arg1 : i32
    %c0_i32 = arith.constant 0 : i32
    %c0_i32_0 = arith.constant 0 : i32
    return %c0_i32, %1 : i32, i32
  }
}

</mosaic_0001>

<llo_original>
// kernel: tpu_custom_call.1
$region0: #{tpu_custom_call.1}
  #allocation0 [shape = 'u32[]', space=smem, size = 0x4, offset = 0x4, fixed_abs, tag = 'smem constant byte address 0x4 - core index']
  #allocation1 [shape = 'u32[144,128]{1,0:T(1,128)}', space=vmem, size = 0x12000, scoped, tag = 'internal scratch']
  #allocation2 [shape = 'f32[1,32]{1,0:T(1,128)}', space=vmem, size = 0x200, scoped, tag = 'scratch operand']
  #allocation3 [shape = 'f32[1,32]{1,0:T(1,128)}', space=vmem, size = 0x200, scoped, tag = 'scratch operand']
  %s0 = inlined_call_operand.vmem [shape: f32[64,32], index: 0, kind: input, shape index: {}]
  %s1 = inlined_call_operand.vmem [shape: f32[1,32], index: 1, kind: input, shape index: {}]
  %s2 = inlined_call_operand.vmem [shape: f32[1,32], index: 2, kind: input, shape index: {}]
  %s3 = inlined_call_operand.vmem [shape: bf16[1,32,128], index: 3, kind: input, shape index: {}]
  %s4 = inlined_call_operand.vmem [shape: f32[3,128], index: 4, kind: input, shape index: {}]
  %s5 = inlined_call_operand.vmem [shape: bf16[128,128], index: 5, kind: input, shape index: {}]
  %s6 = inlined_call_operand.hbm [shape: f32[1,64,128], index: 6, kind: output, shape index: {0}]
  %s7 = inlined_call_operand.hbm [shape: bf16[64,128], index: 7, kind: output, shape index: {1}]
  %8 = xla_tuple %s6, %s7
  %s9 = sld [smem:[#allocation0]]
  $region46: #{tpu_custom_call.1} parent=0
    _
  %s11 = ssub.s32 1, %s9
  %s12 = scalar_select 0, %s11, %s9
  $region1: #{tpu_custom_call.1} parent=0
    #allocation4 [shape = 'u8[32768]{0}', space=vmem, size = 0x8000, scoped, tag = 'output window, operand 0, single buffered']
    #allocation5 [shape = 's32[1]{0}', space=sflag, size = 0x4, scoped, tag = 'scoped memory for tpu_custom_call.1']
    #allocation6 [shape = 'u8[16384]{0}', space=vmem, size = 0x4000, scoped, tag = 'output window, operand 1, single buffered']
    #allocation7 [shape = 's32[1]{0}', space=sflag, size = 0x4, scoped, tag = 'scoped memory for tpu_custom_call.1']
    %13 = vsyncpa [#allocation5], 0
    %14 = vsyncpa [#allocation7], 0
    // Predicated region
    $region2: #{tpu_custom_call.1} parent=1 // pred_check
      _
    $region3: #{tpu_custom_call.1} parent=1 // pred_check_branch
      %16 = sbr.rel (0) target = $region5
    $region4: #{tpu_custom_call.1} parent=1 // pred_region
      _
    $region5: #{tpu_custom_call.1} parent=1 // pred_fallthru
      _
    // Predicated region
    $region6: #{tpu_custom_call.1} parent=1 // pred_check
      _
    $region7: #{tpu_custom_call.1} parent=1 // pred_check_branch
      %18 = sbr.rel (0) target = $region9
    $region8: #{tpu_custom_call.1} parent=1 // pred_region
      _
    $region9: #{tpu_custom_call.1} parent=1 // pred_fallthru
      _
    // Predicated region
    $region10: #{tpu_custom_call.1} parent=1 // pred_check
      _
    $region11: #{tpu_custom_call.1} parent=1 // pred_check_branch
      %20 = sbr.rel (0) target = $region13
    $region12: #{tpu_custom_call.1} parent=1 // pred_region
      _
    $region13: #{tpu_custom_call.1} parent=1 // pred_fallthru
      _
    // Predicated region
    $region14: #{tpu_custom_call.1} parent=1 // pred_check
      _
    $region15: #{tpu_custom_call.1} parent=1 // pred_check_branch
      %22 = sbr.rel (0) target = $region17
    $region16: #{tpu_custom_call.1} parent=1 // pred_region
      %s23 = sadd.s32 0, 0
      %p24 = scmp.lt.s32.totalorder %s23, 0
      %s25 = scalar_select %p24, %s23, 0
      %s26 = smul.addr %s25, 4
      %s27 = smul.addr %s26, 4
      %s28 = scalar_lea.vmem %s3, %s27
      %s29 = sadd.s32 0, 0
    $region17: #{tpu_custom_call.1} parent=1 // pred_fallthru
      _
    // Predicated region
    $region18: #{tpu_custom_call.1} parent=1 // pred_check
      _
    $region19: #{tpu_custom_call.1} parent=1 // pred_check_branch
      %31 = sbr.rel (0) target = $region21
    $region20: #{tpu_custom_call.1} parent=1 // pred_region
      %s32 = sadd.s32 0, 0
      %p33 = scmp.lt.s32.totalorder %s32, 0
      %s34 = scalar_select %p33, %s32, 0
      %s35 = smul.addr %s34, 4
      %s36 = scalar_lea.vmem %s4, %s35
      %s37 = sadd.s32 0, 0
    $region21: #{tpu_custom_call.1} parent=1 // pred_fallthru
      _
    // Predicated region
    $region22: #{tpu_custom_call.1} parent=1 // pred_check
      _
    $region23: #{tpu_custom_call.1} parent=1 // pred_check_branch
      %39 = sbr.rel (0) target = $region25
    $region24: #{tpu_custom_call.1} parent=1 // pred_region
      %s40 = sadd.s32 0, 0
      %s41 = smul.u32 16, %s40
      %p42 = scmp.lt.s32.totalorder %s41, 15
      %s43 = scalar_select %p42, %s41, 15
      %s44 = smul.addr %s43, 4
      %s45 = scalar_lea.vmem %s5, %s44
      %s46 = sadd.s32 0, 0
      %s47 = smul.u32 16, %s46
    $region25: #{tpu_custom_call.1} parent=1 // pred_fallthru
      _
    %s48 = sadd.s32 0, 0
    %p49 = scmp.lt.s32.totalorder %s48, 0
    %s50 = scalar_select %p49, %s48, 0
    %s51 = smul.addr %s50, 4
    %s52 = smul.addr %s51, 4
    %s53 = scalar_lea.vmem %s3, %s52
    %s54 = sadd.s32 0, 0
    %p55 = scmp.lt.s32.totalorder %s54, 0
    %s56 = scalar_select %p55, %s54, 0
    %s57 = smul.addr %s56, 4
    %s58 = scalar_lea.vmem %s4, %s57
    %s59 = sadd.s32 0, 0
    %s60 = smul.u32 16, %s59
    %p61 = scmp.lt.s32.totalorder %s60, 15
    %s62 = scalar_select %p61, %s60, 15
    %s63 = smul.addr %s62, 4
    %s64 = scalar_lea.vmem %s5, %s63
    %s65 = sadd.s32 0, 0
    %p66 = scmp.lt.s32.totalorder %s65, 0
    %s67 = scalar_select %p66, %s65, 0
    %s68 = smul.addr %s67, 4
    %s69 = smul.addr %s68, 4
    %s70 = scalar_lea.vmem %s3, %s69
    %s71 = sadd.s32 0, 0
    %s72 = sadd.s32 0, 0
    %p73 = scmp.lt.s32.totalorder %s72, 0
    %s74 = scalar_select %p73, %s72, 0
    %s75 = smul.addr %s74, 4
    %s76 = scalar_lea.vmem %s4, %s75
    %s77 = sadd.s32 0, 0
    %s78 = sadd.s32 0, 0
    %s79 = smul.u32 16, %s78
    %p80 = scmp.lt.s32.totalorder %s79, 15
    %s81 = scalar_select %p80, %s79, 15
    %s82 = smul.addr %s81, 4
    %s83 = scalar_lea.vmem %s5, %s82
    %s84 = sadd.s32 0, 0
    %s85 = smul.u32 16, %s84
    %s86 = sadd.s32 0, 0
    %p88 = scmp.eq.s32.totalorder 0, 0
    // Predicated region
    $region26: #{tpu_custom_call.1} parent=1 // pred_check
      %p89 = pneg %p88
    $region27: #{tpu_custom_call.1} parent=1 // pred_check_branch
      %91 = sbr.rel (%p89) target = $region29
    $region28: #{tpu_custom_call.1} parent=1 // pred_region
      %v92 = vld [vmem:[%s0] sm:$0xff]
      %v93 = vld [vmem:[%s0 + $0x8] sm:$0xff]
      %v94 = vld [vmem:[%s0 + $0x10] sm:$0xff]
      %v95 = vld [vmem:[%s0 + $0x18] sm:$0xff]
      %v96 = vld [vmem:[%s0 + $0x20] sm:$0xff]
      %v97 = vld [vmem:[%s0 + $0x28] sm:$0xff]
      %v98 = vld [vmem:[%s0 + $0x30] sm:$0xff]
      %v99 = vld [vmem:[%s0 + $0x38] sm:$0xff]
      %vm100 = vcmask 261120
      %v101 = vsel %vm100, %v92, 0.0
      %v102 = vsel %vm100, %v93, 0.0
      %v103 = vadd.f32 %v101, %v102
      %v104 = vsel %vm100, %v94, 0.0
      %v105 = vadd.f32 %v103, %v104
      %v106 = vsel %vm100, %v95, 0.0
      %v107 = vadd.f32 %v105, %v106
      %v108 = vsel %vm100, %v96, 0.0
      %v109 = vadd.f32 %v107, %v108
      %v110 = vsel %vm100, %v97, 0.0
      %v111 = vadd.f32 %v109, %v110
      %v112 = vsel %vm100, %v98, 0.0
      %v113 = vadd.f32 %v111, %v112
      %v114 = vsel %vm100, %v99, 0.0
      %v115 = vadd.f32 %v113, %v114
      %v116 = vrot.slane %v115, 4
      %v117 = vadd.f32 %v115, %v116
      %v118 = vrot.slane %v117, 2
      %v119 = vadd.f32 %v117, %v118
      %v120 = vrot.slane %v119, 1
      %v121 = vadd.f32 %v119, %v120
      %v122 = vmul.f32 %v121, 0.015625
      %v123 = vsub.f32 %v92, %v122
      %v124 = vsub.f32 %v93, %v122
      %v125 = vsub.f32 %v94, %v122
      %v126 = vsub.f32 %v95, %v122
      %v127 = vsub.f32 %v96, %v122
      %v128 = vsub.f32 %v97, %v122
      %v129 = vsub.f32 %v98, %v122
      %v130 = vsub.f32 %v99, %v122
      %v131 = vmul.f32 %v123, %v123
      %v132 = vmul.f32 %v124, %v124
      %v133 = vmul.f32 %v125, %v125
      %v134 = vmul.f32 %v126, %v126
      %v135 = vmul.f32 %v127, %v127
      %v136 = vmul.f32 %v128, %v128
      %v137 = vmul.f32 %v129, %v129
      %v138 = vmul.f32 %v130, %v130
      %v139 = vsel %vm100, %v131, 0.0
      %v140 = vsel %vm100, %v132, 0.0
      %v141 = vadd.f32 %v139, %v140
      %v142 = vsel %vm100, %v133, 0.0
      %v143 = vadd.f32 %v141, %v142
      %v144 = vsel %vm100, %v134, 0.0
      %v145 = vadd.f32 %v143, %v144
      %v146 = vsel %vm100, %v135, 0.0
      %v147 = vadd.f32 %v145, %v146
      %v148 = vsel %vm100, %v136, 0.0
      %v149 = vadd.f32 %v147, %v148
      %v150 = vsel %vm100, %v137, 0.0
      %v151 = vadd.f32 %v149, %v150
      %v152 = vsel %vm100, %v138, 0.0
      %v153 = vadd.f32 %v151, %v152
      %v154 = vrot.slane %v153, 4
      %v155 = vadd.f32 %v153, %v154
      %v156 = vrot.slane %v155, 2
      %v157 = vadd.f32 %v155, %v156
      %v158 = vrot.slane %v157, 1
      %v159 = vadd.f32 %v157, %v158
      %v160 = vmul.f32 %v159, 0.015625
      %v161 = vld [vmem:[%s1] sm:$0x1]
      %v162 = vadd.f32 %v160, 1e-05
      %v163 = vrsqrt.pop %v162
      %v164 = vmul.f32 %v161, %v163
      %vm165 = vcmask 253952
      %166 = vst.msk [vmem:[#allocation2] sm:$0x1] %vm165, %v164
      %v167 = vld [vmem:[%s2] sm:$0x1]
      %v168 = vmul.f32 %v122, %v164
      %v169 = vsub.f32 %v167, %v168
      %170 = vst.msk [vmem:[#allocation3] sm:$0x1] %vm165, %v169
      %171 = vst [vmem:[#allocation4] sm:$0xff] 0.0
      %172 = vst [vmem:[#allocation4 + $0x8] sm:$0xff] 0.0
      %173 = vst [vmem:[#allocation4 + $0x10] sm:$0xff] 0.0
      %174 = vst [vmem:[#allocation4 + $0x18] sm:$0xff] 0.0
      %175 = vst [vmem:[#allocation4 + $0x20] sm:$0xff] 0.0
      %176 = vst [vmem:[#allocation4 + $0x28] sm:$0xff] 0.0
      %177 = vst [vmem:[#allocation4 + $0x30] sm:$0xff] 0.0
      %178 = vst [vmem:[#allocation4 + $0x38] sm:$0xff] 0.0
    $region29: #{tpu_custom_call.1} parent=1 // pred_fallthru
      _
    %v179 = vld [vmem:[%s0] sm:$0xff]
    %v180 = vld [vmem:[%s0 + $0x8] sm:$0xff]
    %v181 = vld [vmem:[%s0 + $0x10] sm:$0xff]
    %v182 = vld [vmem:[%s0 + $0x18] sm:$0xff]
    %v183 = vld [vmem:[%s0 + $0x20] sm:$0xff]
    %v184 = vld [vmem:[%s0 + $0x28] sm:$0xff]
    %v185 = vld [vmem:[%s0 + $0x30] sm:$0xff]
    %v186 = vld [vmem:[%s0 + $0x38] sm:$0xff]
    %v187 = vld [vmem:[#allocation2] sm:$0x1]
    %v189 = vlaneseq
    %v190 = vshrl.u32 %v189, 7
    %v191 = vsub.s32 0, %v190
    %v192 = vrot.slane %v187, %v191
    %v194 = vmul.f32 %v179, %v192
    %v195 = vmul.f32 %v180, %v192
    %v196 = vmul.f32 %v181, %v192
    %v197 = vmul.f32 %v182, %v192
    %v198 = vmul.f32 %v183, %v192
    %v199 = vmul.f32 %v184, %v192
    %v200 = vmul.f32 %v185, %v192
    %v201 = vmul.f32 %v186, %v192
    %v202 = vld [vmem:[#allocation3] sm:$0x1]
    %v204 = vlaneseq
    %v205 = vshrl.u32 %v204, 7
    %v206 = vsub.s32 0, %v205
    %v207 = vrot.slane %v202, %v206
    %v209 = vadd.f32 %v194, %v207
    %v210 = vadd.f32 %v195, %v207
    %v211 = vadd.f32 %v196, %v207
    %v212 = vadd.f32 %v197, %v207
    %v213 = vadd.f32 %v198, %v207
    %v214 = vadd.f32 %v199, %v207
    %v215 = vadd.f32 %v200, %v207
    %v216 = vadd.f32 %v201, %v207
    %v217 = vpack.c.bf16 %v210, %v209
    %v218 = vpack.c.bf16 %v212, %v211
    %v219 = vpack.c.bf16 %v214, %v213
    %v220 = vpack.c.bf16 %v216, %v215
    %v221 = vld [vmem:[%s70] sm:$0xf]
    %v222 = vld [vmem:[%s70 + $0x4] sm:$0xf]
    %v223 = vld [vmem:[%s70 + $0x8] sm:$0xf]
    %v224 = vld [vmem:[%s70 + $0xc] sm:$0xf]
    %v225 = vld [vmem:[%s76] sm:$0x1]
    %v226 = vlaneseq
    %v227 = vshrl.u32 %v226, 7
    %v228 = vsub.s32 0, %v227
    %v229 = vrot.slane %v225, %v228
    %v234 = vunpack.c.l.b16 %v221
    %v235 = vunpack.c.l.b16 %v222
    %v236 = vunpack.c.l.b16 %v223
    %v237 = vunpack.c.l.b16 %v224
    %v238 = vpack.c.b16 %v235, %v234
    %v239 = vpack.c.b16 %v237, %v236
    %vm242 = vcmask 261120
    %v244 = vsel %vm242, %v217, 0
    %v247 = vsel %vm242, %v218, 0
    %v250 = vsel %vm242, %v219, 0
    %v253 = vsel %vm242, %v220, 0
    %255 = vmatprep.subr.bf16.mxu0 0
    %256 = vmatpush1.bf16.msra.mxu0 %v238
    %257 = vmatprep.subr.bf16.mxu0 0
    %258 = vmatpush1.bf16.msra.mxu0 %v239
    %259 = vmatprep.subr.bf16.mxu0 0
    %260 = vmatpush1.bf16.msra.mxu0 0
    %261 = vmatprep.subr.bf16.mxu0 0
    %262 = vmatpush1.bf16.msra.mxu0 0
    %263 = vmatprep.subr.bf16.mxu0 0
    %264 = vmatpush1.bf16.msra.mxu0 0
    %265 = vmatprep.subr.bf16.mxu0 0
    %266 = vmatpush1.bf16.msra.mxu0 0
    %267 = vmatprep.subr.bf16.mxu0 0
    %268 = vmatpush1.bf16.msra.mxu0 0
    %269 = vmatprep.subr.bf16.mxu0 0
    %270 = vmatpush1.bf16.msra.mxu0 0
    %271 = vmatprep.subr.bf16.mxu0 0
    %272 = vmatpush1.bf16.msra.mxu0 0
    %273 = vmatprep.subr.bf16.mxu0 0
    %274 = vmatpush1.bf16.msra.mxu0 0
    %275 = vmatprep.subr.bf16.mxu0 0
    %276 = vmatpush1.bf16.msra.mxu0 0
    %277 = vmatprep.subr.bf16.mxu0 0
    %278 = vmatpush1.bf16.msra.mxu0 0
    %279 = vmatprep.subr.bf16.mxu0 0
    %280 = vmatpush1.bf16.msra.mxu0 0
    %281 = vmatprep.subr.bf16.mxu0 0
    %282 = vmatpush1.bf16.msra.mxu0 0
    %283 = vmatprep.subr.bf16.mxu0 0
    %284 = vmatpush1.bf16.msra.mxu0 0
    %285 = vmatprep.subr.bf16.mxu0 0
    %286 = vmatpush1.bf16.msra.mxu0 0
    %287 = vmatprep.mubr.bf16.mxu0 0
    %288 = vmatmul.mubr.bf16.gmra.mrb[0].mxu0 %v244
    %v289 = vpop.f32.mrb[0].mxu0
    %v290 = vadd.f32 %v229, %v289
    %v291 = vpop.f32.mrb[0].mxu0
    %v292 = vpop.f32.mrb[0].mxu0
    %v293 = vadd.f32 %v229, %v292
    %v294 = vpop.f32.mrb[0].mxu0
    %295 = vmatprep.mubr.bf16.mxu0 0
    %296 = vmatmul.mubr.bf16.gmra.mrb[0].mxu0 %v247
    %v297 = vpop.f32.mrb[0].mxu0
    %v298 = vadd.f32 %v229, %v297
    %v299 = vpop.f32.mrb[0].mxu0
    %v300 = vpop.f32.mrb[0].mxu0
    %v301 = vadd.f32 %v229, %v300
    %v302 = vpop.f32.mrb[0].mxu0
    %303 = vmatprep.mubr.bf16.mxu0 0
    %304 = vmatmul.mubr.bf16.gmra.mrb[0].mxu0 %v250
    %v305 = vpop.f32.mrb[0].mxu0
    %v306 = vadd.f32 %v229, %v305
    %v307 = vpop.f32.mrb[0].mxu0
    %v308 = vpop.f32.mrb[0].mxu0
    %v309 = vadd.f32 %v229, %v308
    %v310 = vpop.f32.mrb[0].mxu0
    %311 = vmatprep.mubr.bf16.mxu0 0
    %312 = vmatmul.mubr.bf16.gmra.mrb[0].mxu0 %v253
    %v313 = vpop.f32.mrb[0].mxu0
    %v314 = vadd.f32 %v229, %v313
    %v315 = vpop.f32.mrb[0].mxu0
    %v316 = vpop.f32.mrb[0].mxu0
    %v317 = vadd.f32 %v229, %v316
    %v318 = vpop.f32.mrb[0].mxu0
    %319 = vdwg.mxu0
    %v320 = vmax.f32 %v290, 0.0
    %v321 = vmax.f32 %v293, 0.0
    %v322 = vmax.f32 %v298, 0.0
    %v323 = vmax.f32 %v301, 0.0
    %v324 = vmax.f32 %v306, 0.0
    %v325 = vmax.f32 %v309, 0.0
    %v326 = vmax.f32 %v314, 0.0
    %v327 = vmax.f32 %v317, 0.0
    %v328 = vadd.f32 %v320, %v321
    %v329 = vadd.f32 %v328, %v322
    %v330 = vadd.f32 %v329, %v323
    %v331 = vadd.f32 %v330, %v324
    %v332 = vadd.f32 %v331, %v325
    %v333 = vadd.f32 %v332, %v326
    %v334 = vadd.f32 %v333, %v327
    %v335 = vrot.slane %v334, 4
    %v336 = vadd.f32 %v334, %v335
    %v337 = vrot.slane %v336, 2
    %v338 = vadd.f32 %v336, %v337
    %v339 = vrot.slane %v338, 1
    %v340 = vadd.f32 %v338, %v339
    %v341 = vmul.f32 %v340, 0.015625
    %v342 = vsub.f32 %v320, %v341
    %v343 = vsub.f32 %v321, %v341
    %v344 = vsub.f32 %v322, %v341
    %v345 = vsub.f32 %v323, %v341
    %v346 = vsub.f32 %v324, %v341
    %v347 = vsub.f32 %v325, %v341
    %v348 = vsub.f32 %v326, %v341
    %v349 = vsub.f32 %v327, %v341
    %v350 = vmul.f32 %v342, %v342
    %v351 = vmul.f32 %v343, %v343
    %v352 = vmul.f32 %v344, %v344
    %v353 = vmul.f32 %v345, %v345
    %v354 = vmul.f32 %v346, %v346
    %v355 = vmul.f32 %v347, %v347
    %v356 = vmul.f32 %v348, %v348
    %v357 = vmul.f32 %v349, %v349
    %v358 = vadd.f32 %v350, %v351
    %v359 = vadd.f32 %v358, %v352
    %v360 = vadd.f32 %v359, %v353
    %v361 = vadd.f32 %v360, %v354
    %v362 = vadd.f32 %v361, %v355
    %v363 = vadd.f32 %v362, %v356
    %v364 = vadd.f32 %v363, %v357
    %v365 = vrot.slane %v364, 4
    %v366 = vadd.f32 %v364, %v365
    %v367 = vrot.slane %v366, 2
    %v368 = vadd.f32 %v366, %v367
    %v369 = vrot.slane %v368, 1
    %v370 = vadd.f32 %v368, %v369
    %v371 = vmul.f32 %v370, 0.015625
    %v372 = vld [vmem:[%s76 + $0x1] sm:$0x1]
    %v373 = vadd.f32 %v371, 1e-05
    %v374 = vrsqrt.pop %v373
    %v375 = vmul.f32 %v372, %v374
    %v376 = vlaneseq
    %v377 = vshrl.u32 %v376, 7
    %v378 = vsub.s32 0, %v377
    %v379 = vrot.slane %v375, %v378
    %v380 = vmul.f32 %v342, %v379
    %v381 = vmul.f32 %v343, %v379
    %v382 = vmul.f32 %v344, %v379
    %v383 = vmul.f32 %v345, %v379
    %v384 = vmul.f32 %v346, %v379
    %v385 = vmul.f32 %v347, %v379
    %v386 = vmul.f32 %v348, %v379
    %v387 = vmul.f32 %v349, %v379
    %v388 = vld [vmem:[%s76 + $0x2] sm:$0x1]
    %v389 = vlaneseq
    %v390 = vshrl.u32 %v389, 7
    %v391 = vsub.s32 0, %v390
    %v392 = vrot.slane %v388, %v391
    %v393 = vadd.f32 %v380, %v392
    %v394 = vadd.f32 %v381, %v392
    %v395 = vadd.f32 %v382, %v392
    %v396 = vadd.f32 %v383, %v392
    %v397 = vadd.f32 %v384, %v392
    %v398 = vadd.f32 %v385, %v392
    %v399 = vadd.f32 %v386, %v392
    %v400 = vadd.f32 %v387, %v392
    %v401 = vpack.c.bf16 %v394, %v393
    %v402 = vpack.c.bf16 %v396, %v395
    %v403 = vpack.c.bf16 %v398, %v397
    %v404 = vpack.c.bf16 %v400, %v399
    %v409 = vunpack.c.l.b16 %v401
    %v410 = vunpack.c.h.b16 %v401
    %v411 = vunpack.c.l.b16 %v402
    %v412 = vunpack.c.h.b16 %v402
    %v413 = vunpack.c.l.b16 %v403
    %v414 = vunpack.c.h.b16 %v403
    %v415 = vunpack.c.l.b16 %v404
    %v416 = vunpack.c.h.b16 %v404
    %v417 = vpack.c.b16 %v409, %v409
    %v418 = vpack.c.b16 %v410, %v410
    %v419 = vpack.c.b16 %v411, %v411
    %v420 = vpack.c.b16 %v412, %v412
    %v421 = vpack.c.b16 %v413, %v413
    %v422 = vpack.c.b16 %v414, %v414
    %v423 = vpack.c.b16 %v415, %v415
    %v424 = vpack.c.b16 %v416, %v416
    %433 = vst [vmem:[#allocation6] sm:$0xf] %v417
    %434 = vst [vmem:[#allocation6 + $0x4] sm:$0xf] %v418
    %435 = vst [vmem:[#allocation6 + $0x8] sm:$0xf] %v419
    %436 = vst [vmem:[#allocation6 + $0xc] sm:$0xf] %v420
    %437 = vst [vmem:[#allocation6 + $0x10] sm:$0xf] %v421
    %438 = vst [vmem:[#allocation6 + $0x14] sm:$0xf] %v422
    %439 = vst [vmem:[#allocation6 + $0x18] sm:$0xf] %v423
    %440 = vst [vmem:[#allocation6 + $0x1c] sm:$0xf] %v424
    %v441 = vld [vmem:[#allocation4] sm:$0xff]
    %v442 = vld [vmem:[#allocation4 + $0x8] sm:$0xff]
    %v443 = vld [vmem:[#allocation4 + $0x10] sm:$0xff]
    %v444 = vld [vmem:[#allocation4 + $0x18] sm:$0xff]
    %v445 = vld [vmem:[#allocation4 + $0x20] sm:$0xff]
    %v446 = vld [vmem:[#allocation4 + $0x28] sm:$0xff]
    %v447 = vld [vmem:[#allocation4 + $0x30] sm:$0xff]
    %v448 = vld [vmem:[#allocation4 + $0x38] sm:$0xff]
    %v449 = vld [vmem:[%s83] sm:$0xf]
    %v450 = vld [vmem:[%s83 + $0x4] sm:$0xf]
    %v451 = vld [vmem:[%s83 + $0x8] sm:$0xf]
    %v452 = vld [vmem:[%s83 + $0xc] sm:$0xf]
    %v453 = vld [vmem:[%s83 + $0x10] sm:$0xf]
    %v454 = vld [vmem:[%s83 + $0x14] sm:$0xf]
    %v455 = vld [vmem:[%s83 + $0x18] sm:$0xf]
    %v456 = vld [vmem:[%s83 + $0x1c] sm:$0xf]
    %v457 = vld [vmem:[%s83 + $0x20] sm:$0xf]
    %v458 = vld [vmem:[%s83 + $0x24] sm:$0xf]
    %v459 = vld [vmem:[%s83 + $0x28] sm:$0xf]
    %v460 = vld [vmem:[%s83 + $0x2c] sm:$0xf]
    %v461 = vld [vmem:[%s83 + $0x30] sm:$0xf]
    %v462 = vld [vmem:[%s83 + $0x34] sm:$0xf]
    %v463 = vld [vmem:[%s83 + $0x38] sm:$0xf]
    %v464 = vld [vmem:[%s83 + $0x3c] sm:$0xf]
    %v481 = vunpack.c.l.b16 %v449
    %v482 = vunpack.c.l.b16 %v450
    %v483 = vunpack.c.l.b16 %v451
    %v484 = vunpack.c.l.b16 %v452
    %v485 = vunpack.c.l.b16 %v453
    %v486 = vunpack.c.l.b16 %v454
    %v487 = vunpack.c.l.b16 %v455
    %v488 = vunpack.c.l.b16 %v456
    %v489 = vunpack.c.l.b16 %v457
    %v490 = vunpack.c.l.b16 %v458
    %v491 = vunpack.c.l.b16 %v459
    %v492 = vunpack.c.l.b16 %v460
    %v493 = vunpack.c.l.b16 %v461
    %v494 = vunpack.c.l.b16 %v462
    %v495 = vunpack.c.l.b16 %v463
    %v496 = vunpack.c.l.b16 %v464
    %v497 = vpack.c.b16 %v482, %v481
    %v498 = vpack.c.b16 %v484, %v483
    %v499 = vpack.c.b16 %v486, %v485
    %v500 = vpack.c.b16 %v488, %v487
    %v501 = vpack.c.b16 %v490, %v489
    %v502 = vpack.c.b16 %v492, %v491
    %v503 = vpack.c.b16 %v494, %v493
    %v504 = vpack.c.b16 %v496, %v495
    %513 = vmatprep.subr.bf16.mxu0 0
    %514 = vmatpush1.bf16.msra.mxu0 %v497
    %515 = vmatprep.subr.bf16.mxu0 0
    %516 = vmatpush1.bf16.msra.mxu0 %v498
    %517 = vmatprep.subr.bf16.mxu0 0
    %518 = vmatpush1.bf16.msra.mxu0 %v499
    %519 = vmatprep.subr.bf16.mxu0 0
    %520 = vmatpush1.bf16.msra.mxu0 %v500
    %521 = vmatprep.subr.bf16.mxu0 0
    %522 = vmatpush1.bf16.msra.mxu0 %v501
    %523 = vmatprep.subr.bf16.mxu0 0
    %524 = vmatpush1.bf16.msra.mxu0 %v502
    %525 = vmatprep.subr.bf16.mxu0 0
    %526 = vmatpush1.bf16.msra.mxu0 %v503
    %527 = vmatprep.subr.bf16.mxu0 0
    %528 = vmatpush1.bf16.msra.mxu0 %v504
    %529 = vmatprep.subr.bf16.mxu0 0
    %530 = vmatpush1.bf16.msra.mxu0 0
    %531 = vmatprep.subr.bf16.mxu0 0
    %532 = vmatpush1.bf16.msra.mxu0 0
    %533 = vmatprep.subr.bf16.mxu0 0
    %534 = vmatpush1.bf16.msra.mxu0 0
    %535 = vmatprep.subr.bf16.mxu0 0
    %536 = vmatpush1.bf16.msra.mxu0 0
    %537 = vmatprep.subr.bf16.mxu0 0
    %538 = vmatpush1.bf16.msra.mxu0 0
    %539 = vmatprep.subr.bf16.mxu0 0
    %540 = vmatpush1.bf16.msra.mxu0 0
    %541 = vmatprep.subr.bf16.mxu0 0
    %542 = vmatpush1.bf16.msra.mxu0 0
    %543 = vmatprep.subr.bf16.mxu0 0
    %544 = vmatpush1.bf16.msra.mxu0 0
    %545 = vmatprep.mubr.bf16.mxu0 0
    %546 = vmatmul.mubr.bf16.gmra.mrb[0].mxu0 %v401
    %v547 = vpop.f32.mrb[0].mxu0
    %v548 = vadd.f32 0.0, %v547
    %v549 = vpop.f32.mrb[0].mxu0
    %v550 = vpop.f32.mrb[0].mxu0
    %v551 = vadd.f32 0.0, %v550
    %v552 = vpop.f32.mrb[0].mxu0
    %553 = vmatprep.mubr.bf16.mxu0 0
    %554 = vmatmul.mubr.bf16.gmra.mrb[0].mxu0 %v402
    %v555 = vpop.f32.mrb[0].mxu0
    %v556 = vadd.f32 0.0, %v555
    %v557 = vpop.f32.mrb[0].mxu0
    %v558 = vpop.f32.mrb[0].mxu0
    %v559 = vadd.f32 0.0, %v558
    %v560 = vpop.f32.mrb[0].mxu0
    %561 = vmatprep.mubr.bf16.mxu0 0
    %562 = vmatmul.mubr.bf16.gmra.mrb[0].mxu0 %v403
    %v563 = vpop.f32.mrb[0].mxu0
    %v564 = vadd.f32 0.0, %v563
    %v565 = vpop.f32.mrb[0].mxu0
    %v566 = vpop.f32.mrb[0].mxu0
    %v567 = vadd.f32 0.0, %v566
    %v568 = vpop.f32.mrb[0].mxu0
    %569 = vmatprep.mubr.bf16.mxu0 0
    %570 = vmatmul.mubr.bf16.gmra.mrb[0].mxu0 %v404
    %v571 = vpop.f32.mrb[0].mxu0
    %v572 = vadd.f32 0.0, %v571
    %v573 = vpop.f32.mrb[0].mxu0
    %v574 = vpop.f32.mrb[0].mxu0
    %v575 = vadd.f32 0.0, %v574
    %v576 = vpop.f32.mrb[0].mxu0
    %577 = vdwg.mxu0
    %v578 = vadd.f32 %v441, %v548
    %v579 = vadd.f32 %v442, %v551
    %v580 = vadd.f32 %v443, %v556
    %v581 = vadd.f32 %v444, %v559
    %v582 = vadd.f32 %v445, %v564
    %v583 = vadd.f32 %v446, %v567
    %v584 = vadd.f32 %v447, %v572
    %v585 = vadd.f32 %v448, %v575
    %586 = vst [vmem:[#allocation4] sm:$0xff] %v578
    %587 = vst [vmem:[#allocation4 + $0x8] sm:$0xff] %v579
    %588 = vst [vmem:[#allocation4 + $0x10] sm:$0xff] %v580
    %589 = vst [vmem:[#allocation4 + $0x18] sm:$0xff] %v581
    %590 = vst [vmem:[#allocation4 + $0x20] sm:$0xff] %v582
    %591 = vst [vmem:[#allocation4 + $0x28] sm:$0xff] %v583
    %592 = vst [vmem:[#allocation4 + $0x30] sm:$0xff] %v584
    %593 = vst [vmem:[#allocation4 + $0x38] sm:$0xff] %v585
    // Predicated region
    $region30: #{tpu_custom_call.1} parent=1 // pred_check
      _
    $region31: #{tpu_custom_call.1} parent=1 // pred_check_branch
      %595 = sbr.rel (0) target = $region33
    $region32: #{tpu_custom_call.1} parent=1 // pred_region
      %s597 = ssub.s32 1024, 1024
      %598 = vsyncadd [#allocation5], %s597
      %s599 = sshll.u32 [#allocation4], 4
      %s600 = int_to_ptr.vmem [resolvable:$true] %s599
      %605 = dma.vmem_to_hbm [thread:$0]  %s600, 1024, %s6, [#allocation5], 128, 128, 8
    $region33: #{tpu_custom_call.1} parent=1 // pred_fallthru
      _
    // Predicated region
    $region34: #{tpu_custom_call.1} parent=1 // pred_check
      _
    $region35: #{tpu_custom_call.1} parent=1 // pred_check_branch
      %607 = sbr.rel (0) target = $region37
    $region36: #{tpu_custom_call.1} parent=1 // pred_region
      %s608 = sadd.s32 0, 0
      %s610 = ssub.s32 512, 512
      %611 = vsyncadd [#allocation7], %s610
      %s612 = smul.addr %s608, 64
      %s613 = scalar_lea.hbm %s7, %s612
      %s614 = sshll.u32 [#allocation6], 4
      %s615 = int_to_ptr.vmem [resolvable:$true] %s614
      %620 = dma.vmem_to_hbm [thread:$0]  %s615, 512, %s613, [#allocation7], 64, 64, 4
    $region37: #{tpu_custom_call.1} parent=1 // pred_fallthru
      _
    // Predicated region
    $region38: #{tpu_custom_call.1} parent=1 // pred_check
      _
    $region39: #{tpu_custom_call.1} parent=1 // pred_check_branch
      %622 = sbr.rel (0) target = $region41
    $region40: #{tpu_custom_call.1} parent=1 // pred_region
      %623 = dma.done [#allocation5], 1024
    $region41: #{tpu_custom_call.1} parent=1 // pred_fallthru
      _
    // Predicated region
    $region42: #{tpu_custom_call.1} parent=1 // pred_check
      _
    $region43: #{tpu_custom_call.1} parent=1 // pred_check_branch
      %625 = sbr.rel (0) target = $region45
    $region44: #{tpu_custom_call.1} parent=1 // pred_region
      %626 = dma.done [#allocation7], 512
    $region45: #{tpu_custom_call.1} parent=1 // pred_fallthru
      _
    %627 = vsyncpa [#allocation5], 1
    %628 = vsyncpa [#allocation7], 1

</llo_original>
